<compile_context>
chip_gen: v7x
topology: tpu7x:2x2x1
jax: 0.10.0
libtpu: 0.0.40
codegen_flags: <defaults>
</compile_context>

<pallas_src>
import math
from collections.abc import Sequence

import numpy as np
import jax
import jax.numpy as jnp
from jax.experimental import pallas as pl
from jax.experimental.pallas import tpu as pltpu

_NEG_INF = float("-inf")


def _round_up(x: int, m: int) -> int:
    return ((x + m - 1) // m) * m


def _vmem_capacity_bytes() -> int:
    try:
        return int(pltpu.get_tpu_info().vmem_capacity_bytes)
    except Exception:
        return 64 * 2**20  # conservative (v7x per-TC)


def _make_fused_kernel(num_heads: int, h_pad: int):
    """Fused all-heads kernel.

    Refs:
      hid_ref : VMEM (1, C_pad) int32   -- head id per packed column (pad cols = num_heads)
      x_ref   : VMEM (TB, D) f32        -- batch tile of input features
      w_ref   : VMEM (D, C_pad) bf16    -- packed, transposed weights for ALL heads
      s_ref   : VMEM (C_pad, H_pad) f32 -- one-hot segment matrix S
      st_ref  : VMEM (H_pad, C_pad) f32 -- S transposed
      out_ref : VMEM (TB, C_pad) f32    -- packed normalized log-probabilities
    """

    def kernel(hid_ref, x_ref, w_ref, s_ref, st_ref, out_ref):
        # One wide MXU matmul produces logits for every head at once (bf16 x bf16 -> f32).
        x = x_ref[...].astype(jnp.bfloat16)
        logits = jnp.dot(x, w_ref[...], preferred_element_type=jnp.float32)  # (TB, C_pad)
        tb = logits.shape[0]

        hid = hid_ref[...]  # (1, C_pad)
        hrow = jax.lax.broadcasted_iota(jnp.int32, (1, h_pad), 1)

        # Per-head max: 1 compare + 1 select + 1 XLU reduce per head (cheap),
        # accumulated into a lane-dense (TB, H_pad) array.
        m_all = jnp.zeros((tb, h_pad), jnp.float32)
        for h in range(num_heads):
            m_h = jnp.max(jnp.where(hid == h, logits, _NEG_INF), axis=-1, keepdims=True)
            m_all = m_all + jnp.where(hrow == h, m_h, 0.0)

        st = st_ref[...]  # (H_pad, C_pad)
        # Broadcast per-head maxes back to columns on the MXU, then ONE exp pass.
        m_cols = jnp.dot(m_all, st, preferred_element_type=jnp.float32)      # (TB, C_pad)
        e = jnp.exp(logits - m_cols)
        # Per-head exp-sums via one-hot segment matmul (pad columns excluded by S).
        sums = jnp.dot(e, s_ref[...], preferred_element_type=jnp.float32)    # (TB, H_pad)

        # Pad-head columns have sum == 0; add 1 there so log() stays finite and
        # -inf * 0 NaNs cannot appear in the broadcast matmul below.
        if h_pad > num_heads:
            sums = sums + (hrow >= num_heads).astype(jnp.float32)

        lse_all = m_all + jnp.log(sums)                                      # (TB, H_pad)
        lse_cols = jnp.dot(lse_all, st, preferred_element_type=jnp.float32)  # (TB, C_pad)

        # No validity mask: pad columns come out as 0 and are sliced off by callers.
        out_ref[...] = logits - lse_cols

    return kernel


class MultiCategoricalsJax:
    """MultiCategoricals over per-head normalized log-probs stored as ONE packed slab."""

    def __init__(self, packed_log_probs, seg_starts, choices, seg_matrix):
        if len(choices) == 0:
            raise ValueError("Input categoricals collection is empty.")
        self.packed = packed_log_probs                  # (..., C_pad)
        self.seg_starts = tuple(int(s) for s in seg_starts)
        self.choices = tuple(int(c) for c in choices)
        self._seg_matrix = seg_matrix                   # (C_pad, H) one-hot f32
        self._offsets = jnp.asarray(self.seg_starts, jnp.int32)

    @property
    def log_probs(self):
        # Lazy per-head views; hot paths below never need these.
        return [self.packed[..., s:s + c] for s, c in zip(self.seg_starts, self.choices)]

    def sample(self, key, sample_shape: Sequence[int] = ()):
        sample_shape = tuple(sample_shape)
        keys = jax.random.split(key, len(self.choices))
        batch_shape = self.packed.shape[:-1]
        outs = []
        for k, s, c in zip(keys, self.seg_starts, self.choices):
            lp = self.packed[..., s:s + c]
            outs.append(jax.random.categorical(k, lp, axis=-1, shape=sample_shape + batch_shape))
        return jnp.stack(outs, axis=-1)

    def log_prob(self, value):
        # One fused gather on the packed slab: packed-column index = offset + action.
        idx = value.astype(jnp.int32) + self._offsets   # (..., H)
        return jnp.take_along_axis(self.packed, idx, axis=-1)

    def entropy(self):
        # Pad columns hold exactly 0 log-prob -> exp(0)*0 == 0, and S zeroes them anyway.
        plp = jnp.exp(self.packed) * self.packed
        return -jnp.matmul(plp, self._seg_matrix)       # segmented sums via one matmul


class FCMultiCategoricalHeadPallas:
    """FCMultiCategoricalHead forward with a single fused Pallas TPU kernel."""

    def __init__(self, weights, choices_per_category):
        self.choices = [int(c) for c in choices_per_category]
        if len(self.choices) == 0:
            raise ValueError("choices_per_category must be non-empty.")
        weights = [np.asarray(w, np.float32) for w in weights]
        self.dim_in = int(weights[0].shape[1])
        self.num_heads = len(self.choices)

        # Static packed column layout.
        starts, off = [], 0
        for c in self.choices:
            starts.append(off)
            off += c
        self.seg_starts = tuple(starts)
        self.c_tot = off
        self.c_pad = _round_up(self.c_tot, 128)
        self.h_pad = _round_up(self.num_heads, 128)

        # Hoisted out of the forward path: packed/transposed weight slab (bf16),
        # head-id row and one-hot segment matrices, built ONCE at init.
        slab = np.zeros((self.dim_in, self.c_pad), np.float32)
        hid = np.full((1, self.c_pad), self.num_heads, np.int32)
        seg = np.zeros((self.c_pad, self.h_pad), np.float32)
        for h, (w, c, s) in enumerate(zip(weights, self.choices, starts)):
            slab[:, s:s + c] = w.T
            hid[0, s:s + c] = h
            seg[s:s + c, h] = 1.0
        self.w_slab = jnp.asarray(slab).astype(jnp.bfloat16)
        self.head_id = jnp.asarray(hid)
        self.seg_onehot = jnp.asarray(seg)                                   # (C_pad, H_pad)
        self.seg_onehot_t = jnp.asarray(np.ascontiguousarray(seg.T))         # (H_pad, C_pad)
        self.seg_matrix_valid = jnp.asarray(seg[:, : self.num_heads])        # for entropy()

        self._kernel = _make_fused_kernel(self.num_heads, self.h_pad)

    def _pick_batch_tile(self, batch: int):
        cap = _vmem_capacity_bytes()
        budget = int(cap * 0.6)
        d, c_pad, h_pad = self.dim_in, self.c_pad, self.h_pad
        # Fixed residents (double-buffered by the pipeline): bf16 weights, S, S^T, head-id.
        fixed = 2 * 2 * d * c_pad + 2 * 4 * 2 * c_pad * h_pad + 2 * 4 * c_pad
        # Per batch-row: x tile (f32, dbuf) + out tile (f32, dbuf) + in-kernel intermediates.
        per_row = 2 * 4 * d + 2 * 4 * c_pad + 5 * 4 * c_pad + 2 * d
        avail = budget - fixed
        tb = avail // per_row if avail > 0 else 8
        tb = int(max(8, min(tb, 512)))
        tb -= tb % 8
        if batch <= tb:
            tb = batch  # single full block; block dims equal to array dims are always legal
        est = fixed + max(tb, 8) * per_row
        vmem_limit = int(min(cap, max(int(1.5 * est), 32 * 2**20)))
        return tb, vmem_limit

    def _log_probs_packed(self, x2d):
        b, d = x2d.shape
        assert d == self.dim_in
        if x2d.dtype != jnp.float32:
            x2d = x2d.astype(jnp.float32)

        tb, vmem_limit = self._pick_batch_tile(b)
        nb = pl.cdiv(b, tb)  # partial last block handled by Pallas -> no host-side jnp.pad
        c_pad, h_pad = self.c_pad, self.h_pad

        cost = pl.CostEstimate(
            flops=int(2 * b * d * c_pad + 3 * 2 * b * c_pad * h_pad),
            transcendentals=int(b * (c_pad + h_pad)),
            bytes_accessed=int(4 * b * d + 2 * d * c_pad + 4 * b * c_pad
                               + 2 * 4 * c_pad * h_pad + 4 * c_pad),
        )

        out = pl.pallas_call(
            self._kernel,
            out_shape=jax.ShapeDtypeStruct((b, c_pad), jnp.float32),
            grid=(nb,),
            in_specs=[
                pl.BlockSpec((1, c_pad), lambda i: (0, 0)),        # head-id row (resident)
                pl.BlockSpec((tb, d), lambda i: (i, 0)),           # batch tile
                pl.BlockSpec((d, c_pad), lambda i: (0, 0)),        # packed bf16 weights (resident)
                pl.BlockSpec((c_pad, h_pad), lambda i: (0, 0)),    # one-hot S (resident)
                pl.BlockSpec((h_pad, c_pad), lambda i: (0, 0)),    # S^T (resident)
            ],
            out_specs=pl.BlockSpec((tb, c_pad), lambda i: (i, 0)),
            compiler_params=pltpu.CompilerParams(
                dimension_semantics=("parallel",),
                vmem_limit_bytes=vmem_limit,
            ),
            cost_estimate=cost,
        )(self.head_id, x2d, self.w_slab, self.seg_onehot, self.seg_onehot_t)
        return out

    def __call__(self, x):
        lead = x.shape[:-1]
        x2d = x.reshape(-1, x.shape[-1])
        packed = self._log_probs_packed(x2d)                # (B, C_pad)
        packed = packed.reshape(*lead, self.c_pad)
        return MultiCategoricalsJax(packed, self.seg_starts, self.choices,
                                    self.seg_matrix_valid)


if __name__ == "__main__":
    # Small deterministic setup: batch=2, dim_in=32, three heads with 3/5/4 choices.
    B, dim_in = 2, 32
    choices_per_category = [3, 5, 4]

    key = jax.random.PRNGKey(0)
    key, kx = jax.random.split(key)
    x = jax.random.normal(kx, (B, dim_in), dtype=jnp.float32)

    # Deterministic nn.Linear-style init: U(-1/sqrt(dim_in), 1/sqrt(dim_in)), no bias.
    bound = 1.0 / math.sqrt(dim_in)
    weights = []
    for c in choices_per_category:
        key, kw = jax.random.split(key)
        weights.append(jax.random.uniform(kw, (c, dim_in), jnp.float32, -bound, bound))

    head = FCMultiCategoricalHeadPallas(weights, choices_per_category)
    dist = head(x)
    jax.block_until_ready(dist.packed)

    ok = True
    for lp, w, c in zip(dist.log_probs, weights, choices_per_category):
        ref = jax.nn.log_softmax(x @ w.T, axis=-1)
        if lp.shape != (B, c):
            ok = False
        # bf16 weight/activation storage in the matmul -> allow small absolute slack.
        if not jnp.allclose(lp, ref, atol=3e-2, rtol=0.0):
            ok = False
        # Per-head normalization must be (nearly) exact -- epilogue math is f32.
        if not jnp.allclose(jax.scipy.special.logsumexp(lp, axis=-1), 0.0, atol=1e-4):
            ok = False

    # Exercise the distribution wrapper (plain JAX glue, not a kernel).
    key, ks = jax.random.split(key)
    actions = jax.block_until_ready(dist.sample(ks))

    lp_packed = dist.log_prob(actions)
    lp_manual = jnp.stack(
        [jnp.take_along_axis(lp_h, actions[..., i:i + 1], axis=-1)[..., 0]
         for i, lp_h in enumerate(dist.log_probs)], axis=-1)
    if not jnp.allclose(lp_packed, lp_manual, atol=1e-6):
        ok = False

    ent = dist.entropy()
    ent_manual = jnp.stack([-jnp.sum(jnp.exp(lp_h) * lp_h, axis=-1) for lp_h in dist.log_probs],
                           axis=-1)
    if not jnp.allclose(ent, ent_manual, atol=1e-5):
        ok = False

    jax.block_until_ready((lp_packed, ent))

    if ok:
        print("KERNEL_OK")
    else:
        raise SystemExit("mismatch vs reference")
</pallas_src>

<mosaic_0001>
module attributes {stable_mosaic.version = 11 : i64} {
  func.func @kernel(%arg0: i32, %arg1: memref<1x128xi32, #tpu.memory_space<vmem>>, %arg2: memref<2x32xf32, #tpu.memory_space<vmem>>, %arg3: memref<32x128xbf16, #tpu.memory_space<vmem>>, %arg4: memref<128x128xf32, #tpu.memory_space<vmem>>, %arg5: memref<128x128xf32, #tpu.memory_space<vmem>>, %arg6: memref<2x128xf32, #tpu.memory_space<vmem>>) attributes {dimension_semantics = [#tpu.dimension_semantics<parallel>], iteration_bounds = array<i64: 1>, scalar_prefetch = 0 : i64, scratch_operands = 0 : i64, tpu.core_type = #tpu.core_type<tc>, window_params = [{pipeline_mode = #tpu.pipeline_mode<synchronous>, transform_indices = @transform_0, window_bounds = array<i64: 1, 128>}, {transform_indices = @transform_1, window_bounds = array<i64: 2, 32>}, {pipeline_mode = #tpu.pipeline_mode<synchronous>, transform_indices = @transform_2, window_bounds = array<i64: 32, 128>}, {pipeline_mode = #tpu.pipeline_mode<synchronous>, transform_indices = @transform_3, window_bounds = array<i64: 128, 128>}, {pipeline_mode = #tpu.pipeline_mode<synchronous>, transform_indices = @transform_4, window_bounds = array<i64: 128, 128>}, {transform_indices = @transform_5, window_bounds = array<i64: 2, 128>}]} {
    %c0 = arith.constant 0 : index
    %c0_0 = arith.constant 0 : index
    %0 = vector.load %arg2[%c0, %c0_0] : memref<2x32xf32, #tpu.memory_space<vmem>>, vector<2x32xf32>
    %1 = arith.truncf %0 : vector<2x32xf32> to vector<2x32xbf16>
    %c0_1 = arith.constant 0 : index
    %c0_2 = arith.constant 0 : index
    %2 = vector.load %arg3[%c0_1, %c0_2] : memref<32x128xbf16, #tpu.memory_space<vmem>>, vector<32x128xbf16>
    %cst = arith.constant dense<0.000000e+00> : vector<2x128xf32>
    %3 = tpu.matmul %1, %2, %cst {dimension_numbers = #tpu.dot_dimension_numbers<[1], [0], [0], [1], [0, 0, 1, 1], [], []>} : vector<2x32xbf16>, vector<32x128xbf16>, vector<2x128xf32> -> vector<2x128xf32>
    %c0_3 = arith.constant 0 : index
    %c0_4 = arith.constant 0 : index
    %4 = vector.load %arg1[%c0_3, %c0_4] : memref<1x128xi32, #tpu.memory_space<vmem>>, vector<1x128xi32>
    %5 = tpu.iota {dimensions = array<i32: 1>} : vector<1x128xi32>
    %cst_5 = arith.constant 0.000000e+00 : f32
    %6 = vector.broadcast %cst_5 : f32 to vector<2x128xf32>
    %c0_i32 = arith.constant 0 : i32
    %7 = vector.broadcast %c0_i32 : i32 to vector<1x128xi32>
    %8 = arith.cmpi eq, %4, %7 : vector<1x128xi32>
    %cst_6 = arith.constant 0xFF800000 : f32
    %9 = vector.shape_cast %8 : vector<1x128xi1> to vector<1x128xi1>
    %10 = vector.broadcast %9 : vector<1x128xi1> to vector<2x128xi1>
    %11 = vector.broadcast %cst_6 : f32 to vector<2x128xf32>
    %12 = arith.select %10, %3, %11 : vector<2x128xi1>, vector<2x128xf32>
    %cst_7 = arith.constant dense<0xFF800000> : vector<2xf32>
    %13 = vector.multi_reduction <maximumf>, %12, %cst_7 [1] : vector<2x128xf32> to vector<2xf32>
    %14 = vector.shape_cast %13 : vector<2xf32> to vector<2x1xf32>
    %c0_i32_8 = arith.constant 0 : i32
    %15 = vector.broadcast %c0_i32_8 : i32 to vector<1x128xi32>
    %16 = arith.cmpi eq, %5, %15 : vector<1x128xi32>
    %cst_9 = arith.constant 0.000000e+00 : f32
    %17 = vector.shape_cast %16 : vector<1x128xi1> to vector<1x128xi1>
    %18 = vector.broadcast %17 : vector<1x128xi1> to vector<2x128xi1>
    %19 = vector.shape_cast %14 : vector<2x1xf32> to vector<2x1xf32>
    %20 = vector.broadcast %19 : vector<2x1xf32> to vector<2x128xf32>
    %21 = vector.broadcast %cst_9 : f32 to vector<2x128xf32>
    %22 = arith.select %18, %20, %21 : vector<2x128xi1>, vector<2x128xf32>
    %23 = arith.addf %6, %22 : vector<2x128xf32>
    %c1_i32 = arith.constant 1 : i32
    %24 = vector.broadcast %c1_i32 : i32 to vector<1x128xi32>
    %25 = arith.cmpi eq, %4, %24 : vector<1x128xi32>
    %cst_10 = arith.constant 0xFF800000 : f32
    %26 = vector.shape_cast %25 : vector<1x128xi1> to vector<1x128xi1>
    %27 = vector.broadcast %26 : vector<1x128xi1> to vector<2x128xi1>
    %28 = vector.broadcast %cst_10 : f32 to vector<2x128xf32>
    %29 = arith.select %27, %3, %28 : vector<2x128xi1>, vector<2x128xf32>
    %cst_11 = arith.constant dense<0xFF800000> : vector<2xf32>
    %30 = vector.multi_reduction <maximumf>, %29, %cst_11 [1] : vector<2x128xf32> to vector<2xf32>
    %31 = vector.shape_cast %30 : vector<2xf32> to vector<2x1xf32>
    %c1_i32_12 = arith.constant 1 : i32
    %32 = vector.broadcast %c1_i32_12 : i32 to vector<1x128xi32>
    %33 = arith.cmpi eq, %5, %32 : vector<1x128xi32>
    %cst_13 = arith.constant 0.000000e+00 : f32
    %34 = vector.shape_cast %33 : vector<1x128xi1> to vector<1x128xi1>
    %35 = vector.broadcast %34 : vector<1x128xi1> to vector<2x128xi1>
    %36 = vector.shape_cast %31 : vector<2x1xf32> to vector<2x1xf32>
    %37 = vector.broadcast %36 : vector<2x1xf32> to vector<2x128xf32>
    %38 = vector.broadcast %cst_13 : f32 to vector<2x128xf32>
    %39 = arith.select %35, %37, %38 : vector<2x128xi1>, vector<2x128xf32>
    %40 = arith.addf %23, %39 : vector<2x128xf32>
    %c2_i32 = arith.constant 2 : i32
    %41 = vector.broadcast %c2_i32 : i32 to vector<1x128xi32>
    %42 = arith.cmpi eq, %4, %41 : vector<1x128xi32>
    %cst_14 = arith.constant 0xFF800000 : f32
    %43 = vector.shape_cast %42 : vector<1x128xi1> to vector<1x128xi1>
    %44 = vector.broadcast %43 : vector<1x128xi1> to vector<2x128xi1>
    %45 = vector.broadcast %cst_14 : f32 to vector<2x128xf32>
    %46 = arith.select %44, %3, %45 : vector<2x128xi1>, vector<2x128xf32>
    %cst_15 = arith.constant dense<0xFF800000> : vector<2xf32>
    %47 = vector.multi_reduction <maximumf>, %46, %cst_15 [1] : vector<2x128xf32> to vector<2xf32>
    %48 = vector.shape_cast %47 : vector<2xf32> to vector<2x1xf32>
    %c2_i32_16 = arith.constant 2 : i32
    %49 = vector.broadcast %c2_i32_16 : i32 to vector<1x128xi32>
    %50 = arith.cmpi eq, %5, %49 : vector<1x128xi32>
    %cst_17 = arith.constant 0.000000e+00 : f32
    %51 = vector.shape_cast %50 : vector<1x128xi1> to vector<1x128xi1>
    %52 = vector.broadcast %51 : vector<1x128xi1> to vector<2x128xi1>
    %53 = vector.shape_cast %48 : vector<2x1xf32> to vector<2x1xf32>
    %54 = vector.broadcast %53 : vector<2x1xf32> to vector<2x128xf32>
    %55 = vector.broadcast %cst_17 : f32 to vector<2x128xf32>
    %56 = arith.select %52, %54, %55 : vector<2x128xi1>, vector<2x128xf32>
    %57 = arith.addf %40, %56 : vector<2x128xf32>
    %c0_18 = arith.constant 0 : index
    %c0_19 = arith.constant 0 : index
    %58 = vector.load %arg5[%c0_18, %c0_19] : memref<128x128xf32, #tpu.memory_space<vmem>>, vector<128x128xf32>
    %cst_20 = arith.constant dense<0.000000e+00> : vector<2x128xf32>
    %59 = tpu.matmul %57, %58, %cst_20 {dimension_numbers = #tpu.dot_dimension_numbers<[1], [0], [0], [1], [0, 0, 1, 1], [], []>} : vector<2x128xf32>, vector<128x128xf32>, vector<2x128xf32> -> vector<2x128xf32>
    %60 = arith.subf %3, %59 : vector<2x128xf32>
    %61 = math.exp %60 : vector<2x128xf32>
    %c0_21 = arith.constant 0 : index
    %c0_22 = arith.constant 0 : index
    %62 = vector.load %arg4[%c0_21, %c0_22] : memref<128x128xf32, #tpu.memory_space<vmem>>, vector<128x128xf32>
    %cst_23 = arith.constant dense<0.000000e+00> : vector<2x128xf32>
    %63 = tpu.matmul %61, %62, %cst_23 {dimension_numbers = #tpu.dot_dimension_numbers<[1], [0], [0], [1], [0, 0, 1, 1], [], []>} : vector<2x128xf32>, vector<128x128xf32>, vector<2x128xf32> -> vector<2x128xf32>
    %c3_i32 = arith.constant 3 : i32
    %64 = vector.broadcast %c3_i32 : i32 to vector<1x128xi32>
    %65 = arith.cmpi sge, %5, %64 : vector<1x128xi32>
    %66 = arith.extui %65 : vector<1x128xi1> to vector<1x128xi32>
    %67 = arith.sitofp %66 : vector<1x128xi32> to vector<1x128xf32>
    %68 = vector.broadcast %67 : vector<1x128xf32> to vector<2x128xf32>
    %69 = arith.addf %63, %68 : vector<2x128xf32>
    %70 = math.log %69 : vector<2x128xf32>
    %71 = arith.addf %57, %70 : vector<2x128xf32>
    %cst_24 = arith.constant dense<0.000000e+00> : vector<2x128xf32>
    %72 = tpu.matmul %71, %58, %cst_24 {dimension_numbers = #tpu.dot_dimension_numbers<[1], [0], [0], [1], [0, 0, 1, 1], [], []>} : vector<2x128xf32>, vector<128x128xf32>, vector<2x128xf32> -> vector<2x128xf32>
    %73 = arith.subf %3, %72 : vector<2x128xf32>
    %c0_25 = arith.constant 0 : index
    %c0_26 = arith.constant 0 : index
    %74 = vector.load %arg6[%c0_25, %c0_26] : memref<2x128xf32, #tpu.memory_space<vmem>>, vector<2x128xf32>
    tpu.vector_store %arg6[%c0_25, %c0_26], %73 {strides = array<i32>} : memref<2x128xf32, #tpu.memory_space<vmem>>, vector<2x128xf32>,
    return
  }
  func.func @transform_0(%arg0: i32) -> (i32, i32) {
    %c0_i32 = arith.constant 0 : i32
    %c0_i32_0 = arith.constant 0 : i32
    %c0_i32_1 = arith.constant 0 : i32
    return %c0_i32, %c0_i32_0 : i32, i32
  }
  func.func @transform_1(%arg0: i32) -> (i32, i32) {
    %c0_i32 = arith.constant 0 : i32
    %c0_i32_0 = arith.constant 0 : i32
    return %arg0, %c0_i32 : i32, i32
  }
  func.func @transform_2(%arg0: i32) -> (i32, i32) {
    %c0_i32 = arith.constant 0 : i32
    %c0_i32_0 = arith.constant 0 : i32
    %c0_i32_1 = arith.constant 0 : i32
    return %c0_i32, %c0_i32_0 : i32, i32
  }
  func.func @transform_3(%arg0: i32) -> (i32, i32) {
    %c0_i32 = arith.constant 0 : i32
    %c0_i32_0 = arith.constant 0 : i32
    %c0_i32_1 = arith.constant 0 : i32
    return %c0_i32, %c0_i32_0 : i32, i32
  }
  func.func @transform_4(%arg0: i32) -> (i32, i32) {
    %c0_i32 = arith.constant 0 : i32
    %c0_i32_0 = arith.constant 0 : i32
    %c0_i32_1 = arith.constant 0 : i32
    return %c0_i32, %c0_i32_0 : i32, i32
  }
  func.func @transform_5(%arg0: i32) -> (i32, i32) {
    %c0_i32 = arith.constant 0 : i32
    %c0_i32_0 = arith.constant 0 : i32
    return %arg0, %c0_i32 : i32, i32
  }
}

</mosaic_0001>

<llo_original>
// kernel: tpu_custom_call.1
$region0: #{tpu_custom_call.1}
  #allocation0 [shape = 'u32[]', space=smem, size = 0x4, offset = 0x4, fixed_abs, tag = 'smem constant byte address 0x4 - core index']
  #allocation1 [shape = 'u32[144,128]{1,0:T(1,128)}', space=vmem, size = 0x12000, scoped, tag = 'internal scratch']
  %s0 = inlined_call_operand.hbm [shape: s32[1,128], index: 0, kind: input, shape index: {}]
  %s1 = inlined_call_operand.vmem [shape: f32[2,32], index: 1, kind: input, shape index: {}]
  %s2 = inlined_call_operand.hbm [shape: bf16[32,128], index: 2, kind: input, shape index: {}]
  %s3 = inlined_call_operand.hbm [shape: f32[128,128], index: 3, kind: input, shape index: {}]
  %s4 = inlined_call_operand.hbm [shape: f32[128,128], index: 4, kind: input, shape index: {}]
  %s5 = inlined_call_operand.hbm [shape: f32[2,128], index: 5, kind: output, shape index: {}]
  %s6 = sld [smem:[#allocation0]]
  $region46: #{tpu_custom_call.1} parent=0
    _
  %s8 = ssub.s32 1, %s6
  %s9 = scalar_select 0, %s8, %s6
  $region1: #{tpu_custom_call.1} parent=0
    #allocation2 [shape = 'u8[512]{0}', space=vmem, size = 0x400, scoped, tag = 'input window, operand 0, single buffered']
    #allocation3 [shape = 's32[1]{0}', space=sflag, size = 0x4, scoped, tag = 'scoped memory for tpu_custom_call.1']
    #allocation4 [shape = 's32[1]{0}', space=sflag, size = 0x4, scoped, tag = 'scoped memory for tpu_custom_call.1']
    #allocation5 [shape = 'u8[8192]{0}', space=vmem, size = 0x2000, scoped, tag = 'input window, operand 2, single buffered']
    #allocation6 [shape = 's32[1]{0}', space=sflag, size = 0x4, scoped, tag = 'scoped memory for tpu_custom_call.1']
    #allocation7 [shape = 'u8[65536]{0}', space=vmem, size = 0x10000, scoped, tag = 'input window, operand 3, single buffered']
    #allocation8 [shape = 'u8[65536]{0}', space=vmem, size = 0x10000, scoped, tag = 'input window, operand 4, single buffered']
    #allocation9 [shape = 's32[1]{0}', space=sflag, size = 0x4, scoped, tag = 'scoped memory for tpu_custom_call.1']
    #allocation10 [shape = 'u8[1024]{0}', space=vmem, size = 0x400, scoped, tag = 'output window, operand 0, single buffered']
    %10 = vsyncpa [#allocation3], 0
    %11 = vsyncpa [#allocation6], 0
    %12 = vsyncpa [#allocation9], 0
    %13 = vsyncpa [#allocation4], 0
    // Predicated region
    $region2: #{tpu_custom_call.1} parent=1 // pred_check
      _
    $region3: #{tpu_custom_call.1} parent=1 // pred_check_branch
      %15 = sbr.rel (0) target = $region5
    $region4: #{tpu_custom_call.1} parent=1 // pred_region
      %s17 = ssub.s32 16, 16
      %18 = vsyncadd [#allocation3], %s17
      %s20 = sshll.u32 [#allocation2], 4
      %s21 = int_to_ptr.vmem [resolvable:$true] %s20
      %23 = dma.hbm_to_vmem [thread:$0]  %s0, 16, %s21, [#allocation3]
    $region5: #{tpu_custom_call.1} parent=1 // pred_fallthru
      _
    // Predicated region
    $region6: #{tpu_custom_call.1} parent=1 // pred_check
      _
    $region7: #{tpu_custom_call.1} parent=1 // pred_check_branch
      %25 = sbr.rel (0) target = $region9
    $region8: #{tpu_custom_call.1} parent=1 // pred_region
      _
    $region9: #{tpu_custom_call.1} parent=1 // pred_fallthru
      _
    // Predicated region
    $region10: #{tpu_custom_call.1} parent=1 // pred_check
      _
    $region11: #{tpu_custom_call.1} parent=1 // pred_check_branch
      %27 = sbr.rel (0) target = $region13
    $region12: #{tpu_custom_call.1} parent=1 // pred_region
      %s29 = ssub.s32 256, 256
      %30 = vsyncadd [#allocation6], %s29
      %s31 = sshll.u32 [#allocation5], 4
      %s32 = int_to_ptr.vmem [resolvable:$true] %s31
      %37 = dma.hbm_to_vmem [thread:$0]  %s2, 256, %s32, [#allocation6], 64, 64, 4
    $region13: #{tpu_custom_call.1} parent=1 // pred_fallthru
      _
    // Predicated region
    $region14: #{tpu_custom_call.1} parent=1 // pred_check
      _
    $region15: #{tpu_custom_call.1} parent=1 // pred_check_branch
      %39 = sbr.rel (0) target = $region17
    $region16: #{tpu_custom_call.1} parent=1 // pred_region
      %s41 = ssub.s32 2048, 2048
      %42 = vsyncadd [#allocation6], %s41
      %s43 = sshll.u32 [#allocation7], 4
      %s44 = int_to_ptr.vmem [resolvable:$true] %s43
      %49 = dma.hbm_to_vmem [thread:$0]  %s3, 2048, %s44, [#allocation6], 128, 128, 8
    $region17: #{tpu_custom_call.1} parent=1 // pred_fallthru
      _
    // Predicated region
    $region18: #{tpu_custom_call.1} parent=1 // pred_check
      _
    $region19: #{tpu_custom_call.1} parent=1 // pred_check_branch
      %51 = sbr.rel (0) target = $region21
    $region20: #{tpu_custom_call.1} parent=1 // pred_region
      %s53 = ssub.s32 2048, 2048
      %54 = vsyncadd [#allocation9], %s53
      %s55 = sshll.u32 [#allocation8], 4
      %s56 = int_to_ptr.vmem [resolvable:$true] %s55
      %61 = dma.hbm_to_vmem [thread:$0]  %s4, 2048, %s56, [#allocation9], 128, 128, 8
    $region21: #{tpu_custom_call.1} parent=1 // pred_fallthru
      _
    // Predicated region
    $region22: #{tpu_custom_call.1} parent=1 // pred_check
      _
    $region23: #{tpu_custom_call.1} parent=1 // pred_check_branch
      %63 = sbr.rel (0) target = $region25
    $region24: #{tpu_custom_call.1} parent=1 // pred_region
      %64 = dma.done [#allocation3], 16
    $region25: #{tpu_custom_call.1} parent=1 // pred_fallthru
      _
    // Predicated region
    $region26: #{tpu_custom_call.1} parent=1 // pred_check
      _
    $region27: #{tpu_custom_call.1} parent=1 // pred_check_branch
      %66 = sbr.rel (0) target = $region29
    $region28: #{tpu_custom_call.1} parent=1 // pred_region
      %67 = dma.done [#allocation6], 256
    $region29: #{tpu_custom_call.1} parent=1 // pred_fallthru
      _
    // Predicated region
    $region30: #{tpu_custom_call.1} parent=1 // pred_check
      _
    $region31: #{tpu_custom_call.1} parent=1 // pred_check_branch
      %69 = sbr.rel (0) target = $region33
    $region32: #{tpu_custom_call.1} parent=1 // pred_region
      %70 = dma.done [#allocation6], 2048
    $region33: #{tpu_custom_call.1} parent=1 // pred_fallthru
      _
    // Predicated region
    $region34: #{tpu_custom_call.1} parent=1 // pred_check
      _
    $region35: #{tpu_custom_call.1} parent=1 // pred_check_branch
      %72 = sbr.rel (0) target = $region37
    $region36: #{tpu_custom_call.1} parent=1 // pred_region
      %73 = dma.done [#allocation9], 2048
    $region37: #{tpu_custom_call.1} parent=1 // pred_fallthru
      _
    %v75 = vld [vmem:[%s1] sm:$0x3]
    %v76 = vpack.c.bf16 %v75, %v75
    %v77 = vld [vmem:[#allocation5] sm:$0xf]
    %v78 = vld [vmem:[#allocation5 + $0x4] sm:$0xf]
    %v79 = vld [vmem:[#allocation5 + $0x8] sm:$0xf]
    %v80 = vld [vmem:[#allocation5 + $0xc] sm:$0xf]
    %v85 = vunpack.c.l.b16 %v77
    %v86 = vunpack.c.l.b16 %v78
    %v87 = vunpack.c.l.b16 %v79
    %v88 = vunpack.c.l.b16 %v80
    %v89 = vpack.c.b16 %v86, %v85
    %v90 = vpack.c.b16 %v88, %v87
    %vm93 = vcmask 261120
    %v95 = vsel %vm93, %v76, 0
    %97 = vmatprep.subr.bf16.mxu0 0
    %98 = vmatpush1.bf16.msra.mxu0 %v89
    %99 = vmatprep.subr.bf16.mxu0 0
    %100 = vmatpush1.bf16.msra.mxu0 %v90
    %101 = vmatprep.subr.bf16.mxu0 0
    %102 = vmatpush1.bf16.msra.mxu0 0
    %103 = vmatprep.subr.bf16.mxu0 0
    %104 = vmatpush1.bf16.msra.mxu0 0
    %105 = vmatprep.subr.bf16.mxu0 0
    %106 = vmatpush1.bf16.msra.mxu0 0
    %107 = vmatprep.subr.bf16.mxu0 0
    %108 = vmatpush1.bf16.msra.mxu0 0
    %109 = vmatprep.subr.bf16.mxu0 0
    %110 = vmatpush1.bf16.msra.mxu0 0
    %111 = vmatprep.subr.bf16.mxu0 0
    %112 = vmatpush1.bf16.msra.mxu0 0
    %113 = vmatprep.subr.bf16.mxu0 0
    %114 = vmatpush1.bf16.msra.mxu0 0
    %115 = vmatprep.subr.bf16.mxu0 0
    %116 = vmatpush1.bf16.msra.mxu0 0
    %117 = vmatprep.subr.bf16.mxu0 0
    %118 = vmatpush1.bf16.msra.mxu0 0
    %119 = vmatprep.subr.bf16.mxu0 0
    %120 = vmatpush1.bf16.msra.mxu0 0
    %121 = vmatprep.subr.bf16.mxu0 0
    %122 = vmatpush1.bf16.msra.mxu0 0
    %123 = vmatprep.subr.bf16.mxu0 0
    %124 = vmatpush1.bf16.msra.mxu0 0
    %125 = vmatprep.subr.bf16.mxu0 0
    %126 = vmatpush1.bf16.msra.mxu0 0
    %127 = vmatprep.subr.bf16.mxu0 0
    %128 = vmatpush1.bf16.msra.mxu0 0
    %129 = vmatprep.mubr.bf16.mxu0 0
    %130 = vmatmul.mubr.bf16.gmra.mrb[0].mxu0 %v95
    %v131 = vpop.f32.mrb[0].mxu0
    %v132 = vadd.f32 0.0, %v131
    %v133 = vpop.f32.mrb[0].mxu0
    %v134 = vpop.f32.mrb[0].mxu0
    %v135 = vpop.f32.mrb[0].mxu0
    %136 = vdwg.mxu0
    %v137 = vld [vmem:[#allocation2] sm:$0x1]
    %v138 = vlaneseq
    %v139 = vand.u32 %v138, 127
    %vm140 = vcmp.eq.s32.totalorder %v137, 0
    %v141 = vsel %vm140, 1, 0
    %v142 = vlaneseq
    %v143 = vshrl.u32 %v142, 7
    %v144 = vsub.s32 0, %v143
    %v145 = vrot.slane %v141, %v144
    %vm146 = vcmp.eq.s32.totalorder %v145, 1
    %v147 = vsel %vm146, %v132, -inf
    %vm148 = vcmask 1041408
    %v149 = vsel %vm148, %v147, -inf
    %150 = vmax.xlane.f32.xlu0 %v149
    %v151 = vpop.xlane.xlu0 %150
    %vm152 = vcmp.eq.s32.totalorder %v139, 0
    %v153 = vsel %vm152, 1, 0
    %vm154 = vcmp.eq.s32.totalorder %v153, 1
    %v155 = vsel %vm154, %v151, 0.0
    %v156 = vadd.f32 %v155, 0.0
    %vm157 = vcmp.eq.s32.totalorder %v137, 1
    %v158 = vsel %vm157, 1, 0
    %v159 = vlaneseq
    %v160 = vshrl.u32 %v159, 7
    %v161 = vsub.s32 0, %v160
    %v162 = vrot.slane %v158, %v161
    %vm163 = vcmp.eq.s32.totalorder %v162, 1
    %v164 = vsel %vm163, %v132, -inf
    %v165 = vsel %vm148, %v164, -inf
    %166 = vmax.xlane.f32.xlu0 %v165
    %v167 = vpop.xlane.xlu0 %166
    %vm168 = vcmp.eq.s32.totalorder %v139, 1
    %v169 = vsel %vm168, 1, 0
    %vm170 = vcmp.eq.s32.totalorder %v169, 1
    %v171 = vsel %vm170, %v167, 0.0
    %v172 = vadd.f32 %v156, %v171
    %vm173 = vcmp.eq.s32.totalorder %v137, 2
    %v174 = vsel %vm173, 1, 0
    %v175 = vlaneseq
    %v176 = vshrl.u32 %v175, 7
    %v177 = vsub.s32 0, %v176
    %v178 = vrot.slane %v174, %v177
    %vm179 = vcmp.eq.s32.totalorder %v178, 1
    %v180 = vsel %vm179, %v132, -inf
    %v181 = vsel %vm148, %v180, -inf
    %182 = vmax.xlane.f32.xlu0 %v181
    %v183 = vpop.xlane.xlu0 %182
    %vm184 = vcmp.eq.s32.totalorder %v139, 2
    %v185 = vsel %vm184, 1, 0
    %vm186 = vcmp.eq.s32.totalorder %v185, 1
    %v187 = vsel %vm186, %v183, 0.0
    %v188 = vadd.f32 %v172, %v187
    %v189 = vld [vmem:[#allocation8] sm:$0xff]
    %v190 = vld [vmem:[#allocation8 + $0x8] sm:$0xff]
    %v191 = vld [vmem:[#allocation8 + $0x10] sm:$0xff]
    %v192 = vld [vmem:[#allocation8 + $0x18] sm:$0xff]
    %v193 = vld [vmem:[#allocation8 + $0x20] sm:$0xff]
    %v194 = vld [vmem:[#allocation8 + $0x28] sm:$0xff]
    %v195 = vld [vmem:[#allocation8 + $0x30] sm:$0xff]
    %v196 = vld [vmem:[#allocation8 + $0x38] sm:$0xff]
    %v197 = vld [vmem:[#allocation8 + $0x40] sm:$0xff]
    %v198 = vld [vmem:[#allocation8 + $0x48] sm:$0xff]
    %v199 = vld [vmem:[#allocation8 + $0x50] sm:$0xff]
    %v200 = vld [vmem:[#allocation8 + $0x58] sm:$0xff]
    %v201 = vld [vmem:[#allocation8 + $0x60] sm:$0xff]
    %v202 = vld [vmem:[#allocation8 + $0x68] sm:$0xff]
    %v203 = vld [vmem:[#allocation8 + $0x70] sm:$0xff]
    %v204 = vld [vmem:[#allocation8 + $0x78] sm:$0xff]
    %205 = vmatprep.subr.mxu0 0.0
    %206 = vmatpush1.msra.mxu0 %v189
    %207 = vmatprep.subr.mxu0 0.0
    %208 = vmatpush1.msra.mxu0 %v190
    %209 = vmatprep.subr.mxu0 0.0
    %210 = vmatpush1.msra.mxu0 %v191
    %211 = vmatprep.subr.mxu0 0.0
    %212 = vmatpush1.msra.mxu0 %v192
    %213 = vmatprep.subr.mxu0 0.0
    %214 = vmatpush1.msra.mxu0 %v193
    %215 = vmatprep.subr.mxu0 0.0
    %216 = vmatpush1.msra.mxu0 %v194
    %217 = vmatprep.subr.mxu0 0.0
    %218 = vmatpush1.msra.mxu0 %v195
    %219 = vmatprep.subr.mxu0 0.0
    %220 = vmatpush1.msra.mxu0 %v196
    %221 = vmatprep.subr.mxu0 0.0
    %222 = vmatpush1.msra.mxu0 %v197
    %223 = vmatprep.subr.mxu0 0.0
    %224 = vmatpush1.msra.mxu0 %v198
    %225 = vmatprep.subr.mxu0 0.0
    %226 = vmatpush1.msra.mxu0 %v199
    %227 = vmatprep.subr.mxu0 0.0
    %228 = vmatpush1.msra.mxu0 %v200
    %229 = vmatprep.subr.mxu0 0.0
    %230 = vmatpush1.msra.mxu0 %v201
    %231 = vmatprep.subr.mxu0 0.0
    %232 = vmatpush1.msra.mxu0 %v202
    %233 = vmatprep.subr.mxu0 0.0
    %234 = vmatpush1.msra.mxu0 %v203
    %235 = vmatprep.subr.mxu0 0.0
    %236 = vmatpush1.msra.mxu0 %v204
    %237 = vmatprep.subr.mxu0 0.0
    %238 = vmatpush1.msra.mxu0 0.0
    %239 = vmatprep.subr.mxu0 0.0
    %240 = vmatpush1.msra.mxu0 0.0
    %241 = vmatprep.subr.mxu0 0.0
    %242 = vmatpush1.msra.mxu0 0.0
    %243 = vmatprep.subr.mxu0 0.0
    %244 = vmatpush1.msra.mxu0 0.0
    %245 = vmatprep.subr.mxu0 0.0
    %246 = vmatpush1.msra.mxu0 0.0
    %247 = vmatprep.subr.mxu0 0.0
    %248 = vmatpush1.msra.mxu0 0.0
    %249 = vmatprep.subr.mxu0 0.0
    %250 = vmatpush1.msra.mxu0 0.0
    %251 = vmatprep.subr.mxu0 0.0
    %252 = vmatpush1.msra.mxu0 0.0
    %253 = vmatprep.subr.mxu0 0.0
    %254 = vmatpush1.msra.mxu0 0.0
    %255 = vmatprep.subr.mxu0 0.0
    %256 = vmatpush1.msra.mxu0 0.0
    %257 = vmatprep.subr.mxu0 0.0
    %258 = vmatpush1.msra.mxu0 0.0
    %259 = vmatprep.subr.mxu0 0.0
    %260 = vmatpush1.msra.mxu0 0.0
    %261 = vmatprep.subr.mxu0 0.0
    %262 = vmatpush1.msra.mxu0 0.0
    %263 = vmatprep.subr.mxu0 0.0
    %264 = vmatpush1.msra.mxu0 0.0
    %265 = vmatprep.subr.mxu0 0.0
    %266 = vmatpush1.msra.mxu0 0.0
    %267 = vmatprep.subr.mxu0 0.0
    %268 = vmatpush1.msra.mxu0 0.0
    %269 = vmatprep.mubr.f32.mxu0 0.0
    %270 = vmatmul.mubr.f32.gmra.mrb[0].mxu0 %v188
    %v271 = vpop.f32.mrb[0].mxu0
    %v272 = vadd.f32 0.0, %v271
    %v273 = vpop.f32.mrb[0].mxu0
    %274 = vdwg.mxu0
    %v275 = vsub.f32 %v132, %v272
    %v276 = vmul.f32 %v275, 1.442695
    %v277 = vpow.pop %v276
    %v278 = vld [vmem:[#allocation7] sm:$0xff]
    %v279 = vld [vmem:[#allocation7 + $0x8] sm:$0xff]
    %v280 = vld [vmem:[#allocation7 + $0x10] sm:$0xff]
    %v281 = vld [vmem:[#allocation7 + $0x18] sm:$0xff]
    %v282 = vld [vmem:[#allocation7 + $0x20] sm:$0xff]
    %v283 = vld [vmem:[#allocation7 + $0x28] sm:$0xff]
    %v284 = vld [vmem:[#allocation7 + $0x30] sm:$0xff]
    %v285 = vld [vmem:[#allocation7 + $0x38] sm:$0xff]
    %v286 = vld [vmem:[#allocation7 + $0x40] sm:$0xff]
    %v287 = vld [vmem:[#allocation7 + $0x48] sm:$0xff]
    %v288 = vld [vmem:[#allocation7 + $0x50] sm:$0xff]
    %v289 = vld [vmem:[#allocation7 + $0x58] sm:$0xff]
    %v290 = vld [vmem:[#allocation7 + $0x60] sm:$0xff]
    %v291 = vld [vmem:[#allocation7 + $0x68] sm:$0xff]
    %v292 = vld [vmem:[#allocation7 + $0x70] sm:$0xff]
    %v293 = vld [vmem:[#allocation7 + $0x78] sm:$0xff]
    %vm294 = vcmp.ge.s32.totalorder %v139, 3
    %v295 = vsel %vm294, 1, 0
    %v296 = vcvt.s32.f32 %v295
    %297 = vmatprep.subr.mxu0 0.0
    %298 = vmatpush1.msra.mxu0 %v278
    %299 = vmatprep.subr.mxu0 0.0
    %300 = vmatpush1.msra.mxu0 %v279
    %301 = vmatprep.subr.mxu0 0.0
    %302 = vmatpush1.msra.mxu0 %v280
    %303 = vmatprep.subr.mxu0 0.0
    %304 = vmatpush1.msra.mxu0 %v281
    %305 = vmatprep.subr.mxu0 0.0
    %306 = vmatpush1.msra.mxu0 %v282
    %307 = vmatprep.subr.mxu0 0.0
    %308 = vmatpush1.msra.mxu0 %v283
    %309 = vmatprep.subr.mxu0 0.0
    %310 = vmatpush1.msra.mxu0 %v284
    %311 = vmatprep.subr.mxu0 0.0
    %312 = vmatpush1.msra.mxu0 %v285
    %313 = vmatprep.subr.mxu0 0.0
    %314 = vmatpush1.msra.mxu0 %v286
    %315 = vmatprep.subr.mxu0 0.0
    %316 = vmatpush1.msra.mxu0 %v287
    %317 = vmatprep.subr.mxu0 0.0
    %318 = vmatpush1.msra.mxu0 %v288
    %319 = vmatprep.subr.mxu0 0.0
    %320 = vmatpush1.msra.mxu0 %v289
    %321 = vmatprep.subr.mxu0 0.0
    %322 = vmatpush1.msra.mxu0 %v290
    %323 = vmatprep.subr.mxu0 0.0
    %324 = vmatpush1.msra.mxu0 %v291
    %325 = vmatprep.subr.mxu0 0.0
    %326 = vmatpush1.msra.mxu0 %v292
    %327 = vmatprep.subr.mxu0 0.0
    %328 = vmatpush1.msra.mxu0 %v293
    %329 = vmatprep.subr.mxu0 0.0
    %330 = vmatpush1.msra.mxu0 0.0
    %331 = vmatprep.subr.mxu0 0.0
    %332 = vmatpush1.msra.mxu0 0.0
    %333 = vmatprep.subr.mxu0 0.0
    %334 = vmatpush1.msra.mxu0 0.0
    %335 = vmatprep.subr.mxu0 0.0
    %336 = vmatpush1.msra.mxu0 0.0
    %337 = vmatprep.subr.mxu0 0.0
    %338 = vmatpush1.msra.mxu0 0.0
    %339 = vmatprep.subr.mxu0 0.0
    %340 = vmatpush1.msra.mxu0 0.0
    %341 = vmatprep.subr.mxu0 0.0
    %342 = vmatpush1.msra.mxu0 0.0
    %343 = vmatprep.subr.mxu0 0.0
    %344 = vmatpush1.msra.mxu0 0.0
    %345 = vmatprep.subr.mxu0 0.0
    %346 = vmatpush1.msra.mxu0 0.0
    %347 = vmatprep.subr.mxu0 0.0
    %348 = vmatpush1.msra.mxu0 0.0
    %349 = vmatprep.subr.mxu0 0.0
    %350 = vmatpush1.msra.mxu0 0.0
    %351 = vmatprep.subr.mxu0 0.0
    %352 = vmatpush1.msra.mxu0 0.0
    %353 = vmatprep.subr.mxu0 0.0
    %354 = vmatpush1.msra.mxu0 0.0
    %355 = vmatprep.subr.mxu0 0.0
    %356 = vmatpush1.msra.mxu0 0.0
    %357 = vmatprep.subr.mxu0 0.0
    %358 = vmatpush1.msra.mxu0 0.0
    %359 = vmatprep.subr.mxu0 0.0
    %360 = vmatpush1.msra.mxu0 0.0
    %361 = vmatprep.mubr.f32.mxu0 0.0
    %362 = vmatmul.mubr.f32.gmra.mrb[0].mxu0 %v277
    %v363 = vpop.f32.mrb[0].mxu0
    %v364 = vadd.f32 %v296, %v363
    %v365 = vpop.f32.mrb[0].mxu0
    %366 = vdwg.mxu0
    %v367 = vlog2.pop %v364
    %v368 = vmul.f32 %v367, 0.6931472
    %v369 = vadd.f32 %v188, %v368
    %370 = vmatprep.subr.mxu0 0.0
    %371 = vmatpush1.msra.mxu0 %v189
    %372 = vmatprep.subr.mxu0 0.0
    %373 = vmatpush1.msra.mxu0 %v190
    %374 = vmatprep.subr.mxu0 0.0
    %375 = vmatpush1.msra.mxu0 %v191
    %376 = vmatprep.subr.mxu0 0.0
    %377 = vmatpush1.msra.mxu0 %v192
    %378 = vmatprep.subr.mxu0 0.0
    %379 = vmatpush1.msra.mxu0 %v193
    %380 = vmatprep.subr.mxu0 0.0
    %381 = vmatpush1.msra.mxu0 %v194
    %382 = vmatprep.subr.mxu0 0.0
    %383 = vmatpush1.msra.mxu0 %v195
    %384 = vmatprep.subr.mxu0 0.0
    %385 = vmatpush1.msra.mxu0 %v196
    %386 = vmatprep.subr.mxu0 0.0
    %387 = vmatpush1.msra.mxu0 %v197
    %388 = vmatprep.subr.mxu0 0.0
    %389 = vmatpush1.msra.mxu0 %v198
    %390 = vmatprep.subr.mxu0 0.0
    %391 = vmatpush1.msra.mxu0 %v199
    %392 = vmatprep.subr.mxu0 0.0
    %393 = vmatpush1.msra.mxu0 %v200
    %394 = vmatprep.subr.mxu0 0.0
    %395 = vmatpush1.msra.mxu0 %v201
    %396 = vmatprep.subr.mxu0 0.0
    %397 = vmatpush1.msra.mxu0 %v202
    %398 = vmatprep.subr.mxu0 0.0
    %399 = vmatpush1.msra.mxu0 %v203
    %400 = vmatprep.subr.mxu0 0.0
    %401 = vmatpush1.msra.mxu0 %v204
    %402 = vmatprep.subr.mxu0 0.0
    %403 = vmatpush1.msra.mxu0 0.0
    %404 = vmatprep.subr.mxu0 0.0
    %405 = vmatpush1.msra.mxu0 0.0
    %406 = vmatprep.subr.mxu0 0.0
    %407 = vmatpush1.msra.mxu0 0.0
    %408 = vmatprep.subr.mxu0 0.0
    %409 = vmatpush1.msra.mxu0 0.0
    %410 = vmatprep.subr.mxu0 0.0
    %411 = vmatpush1.msra.mxu0 0.0
    %412 = vmatprep.subr.mxu0 0.0
    %413 = vmatpush1.msra.mxu0 0.0
    %414 = vmatprep.subr.mxu0 0.0
    %415 = vmatpush1.msra.mxu0 0.0
    %416 = vmatprep.subr.mxu0 0.0
    %417 = vmatpush1.msra.mxu0 0.0
    %418 = vmatprep.subr.mxu0 0.0
    %419 = vmatpush1.msra.mxu0 0.0
    %420 = vmatprep.subr.mxu0 0.0
    %421 = vmatpush1.msra.mxu0 0.0
    %422 = vmatprep.subr.mxu0 0.0
    %423 = vmatpush1.msra.mxu0 0.0
    %424 = vmatprep.subr.mxu0 0.0
    %425 = vmatpush1.msra.mxu0 0.0
    %426 = vmatprep.subr.mxu0 0.0
    %427 = vmatpush1.msra.mxu0 0.0
    %428 = vmatprep.subr.mxu0 0.0
    %429 = vmatpush1.msra.mxu0 0.0
    %430 = vmatprep.subr.mxu0 0.0
    %431 = vmatpush1.msra.mxu0 0.0
    %432 = vmatprep.subr.mxu0 0.0
    %433 = vmatpush1.msra.mxu0 0.0
    %434 = vmatprep.mubr.f32.mxu0 0.0
    %435 = vmatmul.mubr.f32.gmra.mrb[0].mxu0 %v369
    %v436 = vpop.f32.mrb[0].mxu0
    %v437 = vadd.f32 0.0, %v436
    %v438 = vpop.f32.mrb[0].mxu0
    %439 = vdwg.mxu0
    %v440 = vsub.f32 %v132, %v437
    %441 = vst [vmem:[#allocation10] sm:$0x3] %v440
    // Predicated region
    $region38: #{tpu_custom_call.1} parent=1 // pred_check
      _
    $region39: #{tpu_custom_call.1} parent=1 // pred_check_branch
      %443 = sbr.rel (0) target = $region41
    $region40: #{tpu_custom_call.1} parent=1 // pred_region
      %s445 = ssub.s32 32, 32
      %446 = vsyncadd [#allocation4], %s445
      %s448 = sshll.u32 [#allocation10], 4
      %s449 = int_to_ptr.vmem [resolvable:$true] %s448
      %451 = dma.vmem_to_hbm [thread:$0]  %s449, 32, %s5, [#allocation4]
    $region41: #{tpu_custom_call.1} parent=1 // pred_fallthru
      _
    // Predicated region
    $region42: #{tpu_custom_call.1} parent=1 // pred_check
      _
    $region43: #{tpu_custom_call.1} parent=1 // pred_check_branch
      %453 = sbr.rel (0) target = $region45
    $region44: #{tpu_custom_call.1} parent=1 // pred_region
      %454 = dma.done [#allocation4], 32
    $region45: #{tpu_custom_call.1} parent=1 // pred_fallthru
      _
    %455 = vsyncpa [#allocation3], 1
    %456 = vsyncpa [#allocation6], 1
    %457 = vsyncpa [#allocation9], 1
    %458 = vsyncpa [#allocation4], 1

</llo_original>
